<compile_context>
chip_gen: v7x
topology: tpu7x:2x2x1
jax: 0.10.0
libtpu: 0.0.40
codegen_flags: <defaults>
</compile_context>

<pallas_src>
import jax
import jax.numpy as jnp
from jax.experimental import pallas as pl
from jax.experimental.pallas import tpu as pltpu


NUM_CLASSES = 5
HEAD_PAD = 128           # lane-dense padded head width
SLOW_C = 2048            # slow pathway feature width
FAST_C = 256             # fast pathway feature width
NEG_INF = -1e30          # padded-logit bias; exp underflows to exactly 0 in f32


# ----------------------------------------------------------------------------
# One-time weight prep: fold the linear stems into the padded head.
#   logits = pool(x_s) @ (w_slow @ w_head_s) + pool(x_f) @ (w_fast @ w_head_f)
#            + (b_slow @ w_head_s + b_fast @ w_head_f + b_head_pad)
# Only valid while the backbone stand-in is a pointwise linear stem.
# ----------------------------------------------------------------------------
def fuse_params(params):
    hp = jax.lax.Precision.HIGHEST
    w_head_pad = jnp.pad(params["w_head"], ((0, 0), (0, HEAD_PAD - NUM_CLASSES)))
    b_head_pad = jnp.pad(params["b_head"], ((0, 0), (0, HEAD_PAD - NUM_CLASSES)),
                         constant_values=NEG_INF)
    w_hs, w_hf = w_head_pad[:SLOW_C, :], w_head_pad[SLOW_C:, :]
    return {
        "w_s": jnp.dot(params["w_slow"], w_hs, precision=hp),          # (3, 128)
        "w_f": jnp.dot(params["w_fast"], w_hf, precision=hp),          # (3, 128)
        "b": (jnp.dot(params["b_slow"], w_hs, precision=hp)
              + jnp.dot(params["b_fast"], w_hf, precision=hp)
              + b_head_pad),                                           # (1, 128)
    }


def _choose_num_thw_tiles(thw_s, thw_f, max_lanes):
    """Fewest grid steps whose per-pathway tiles are 128-lane aligned and within budget."""
    for n in range(1, max(thw_s, thw_f) + 1):
        if thw_s % n or thw_f % n:
            continue
        ts, tf = thw_s // n, thw_f // n
        if ts % 128 == 0 and tf % 128 == 0 and max(ts, tf) <= max_lanes:
            return n
    return 1   # fallback: single full-extent tile (always a legal block shape)


def _accumulate(acc_ref, x_ref, tile):
    """acc[0,c,l] += sum over the tile's 128-lane column chunks (pure VPU adds)."""
    n_full = tile // 128
    tail = tile - n_full * 128
    acc = acc_ref[...]
    if n_full <= 16:
        x = x_ref[...].astype(jnp.float32)          # cast AFTER load (native-dtype HBM read)
        for c in range(n_full):                     # static unroll: VALU adds only
            acc = acc + x[:, :, c * 128:(c + 1) * 128]
    else:
        # TODO(synk): production tile sizes (thousands of chunks) take this rolled loop.
        def body(c, a):
            off = pl.multiple_of(c * 128, 128)
            return a + x_ref[:, :, pl.ds(off, 128)].astype(jnp.float32)
        acc = jax.lax.fori_loop(0, n_full, body, acc)
    if tail:                                        # only in the unaligned single-tile fallback
        t_sum = jnp.sum(x_ref[:, :, n_full * 128:].astype(jnp.float32),
                        axis=-1, keepdims=True)     # (1, 3, 1)
        lane = jax.lax.broadcasted_iota(jnp.int32, acc.shape, 2)
        acc = acc + jnp.where(lane == 0, t_sum, jnp.zeros_like(acc))
    acc_ref[...] = acc


def _make_kernel(thw_s, thw_f, tile_s, tile_f):
    inv_s = 1.0 / float(thw_s)
    inv_f = 1.0 / float(thw_f)

    def kernel(slow_ref, fast_ref, ws_ref, wf_ref, b_ref, o_ref, acc_s, acc_f):
        t = pl.program_id(1)

        @pl.when(t == 0)
        def _():
            acc_s[...] = jnp.zeros_like(acc_s)
            acc_f[...] = jnp.zeros_like(acc_f)

        # Streaming pool: lane-wide f32 partial sums, no XLU reduce in the hot loop.
        _accumulate(acc_s, slow_ref, tile_s)
        _accumulate(acc_f, fast_ref, tile_f)

        @pl.when(t == pl.num_programs(1) - 1)
        def _():
            # Single cross-lane reduce per pathway, then the folded head + softmax.
            slow_mean = jnp.sum(acc_s[...], axis=-1) * inv_s           # (1, 3)
            fast_mean = jnp.sum(acc_f[...], axis=-1) * inv_f           # (1, 3)
            logits = (
                jnp.dot(slow_mean, ws_ref[...], preferred_element_type=jnp.float32)
                + jnp.dot(fast_mean, wf_ref[...], preferred_element_type=jnp.float32)
                + b_ref[...]
            )                                                          # (1, 128)
            m = jnp.max(logits, axis=-1, keepdims=True)
            e = jnp.exp(logits - m)                                    # padded cols -> 0
            denom = jnp.sum(e, axis=-1, keepdims=True)
            o_ref[0] = e * pl.reciprocal(denom, approx=True)           # lane-dense store

    return kernel


def my_slowfast_forward(slow_ncthw, fast_ncthw, fused, *,
                        max_tile_bytes=4 << 20, vmem_limit_bytes=32 << 20):
    """SlowFast forward: list-of-two NCTHW clips -> softmax probabilities (B, 5)."""
    B, C, Ts, Hs, Ws = slow_ncthw.shape
    Bf, Cf, Tf, Hf, Wf = fast_ncthw.shape
    assert B == Bf and C == 3 and Cf == 3

    thw_s = Ts * Hs * Ws
    thw_f = Tf * Hf * Wf

    # Contiguous reshape only: no transpose, no dtype cast (HBM read stays native dtype).
    slow_rows = slow_ncthw.reshape(B, 3, thw_s)
    fast_rows = fast_ncthw.reshape(B, 3, thw_f)

    # Tile the THW streaming-reduce axis. Budget per (1, 3, TILE) pathway tile; the 3
    # channel rows pad to 8 sublanes in VMEM.  4 MiB default keeps 2 pathways x 2
    # pipeline buffers well under every generation's scoped VMEM (v7x: 64 MiB physical).
    itemsize = max(slow_rows.dtype.itemsize, fast_rows.dtype.itemsize)
    max_lanes = max(128, (max_tile_bytes // (8 * itemsize)) // 128 * 128)
    n_tiles = _choose_num_thw_tiles(thw_s, thw_f, max_lanes)
    tile_s = thw_s // n_tiles
    tile_f = thw_f // n_tiles

    kernel = _make_kernel(thw_s, thw_f, tile_s, tile_f)

    grid_spec = pltpu.PrefetchScalarGridSpec(
        num_scalar_prefetch=0,
        grid=(B, n_tiles),                       # B parallel (v7x 2 TCs), reduction last
        in_specs=[
            pl.BlockSpec((1, 3, tile_s), lambda b, t: (b, 0, t)),
            pl.BlockSpec((1, 3, tile_f), lambda b, t: (b, 0, t)),
            pl.BlockSpec((3, HEAD_PAD), lambda b, t: (0, 0)),
            pl.BlockSpec((3, HEAD_PAD), lambda b, t: (0, 0)),
            pl.BlockSpec((1, HEAD_PAD), lambda b, t: (0, 0)),
        ],
        out_specs=pl.BlockSpec((1, 1, HEAD_PAD), lambda b, t: (b, 0, 0)),
        scratch_shapes=[
            pltpu.VMEM((1, 3, HEAD_PAD), jnp.float32),   # slow-pathway lane-wide acc
            pltpu.VMEM((1, 3, HEAD_PAD), jnp.float32),   # fast-pathway lane-wide acc
        ],
    )

    out_padded = pl.pallas_call(
        kernel,
        out_shape=jax.ShapeDtypeStruct((B, 1, HEAD_PAD), jnp.float32),
        grid_spec=grid_spec,
        compiler_params=pltpu.CompilerParams(
            dimension_semantics=("parallel", "arbitrary"),
            vmem_limit_bytes=vmem_limit_bytes,
        ),
    )(slow_rows, fast_rows, fused["w_s"], fused["w_f"], fused["b"])

    # Lane-dense kernel store; tiny slice happens outside the kernel.
    return out_padded[:, 0, :NUM_CLASSES]


def init_params(key):
    ks = jax.random.split(key, 6)
    scale = 0.05
    return {
        "w_slow": scale * jax.random.normal(ks[0], (3, SLOW_C), jnp.float32),
        "b_slow": scale * jax.random.normal(ks[1], (1, SLOW_C), jnp.float32),
        "w_fast": scale * jax.random.normal(ks[2], (3, FAST_C), jnp.float32),
        "b_fast": scale * jax.random.normal(ks[3], (1, FAST_C), jnp.float32),
        "w_head": scale * jax.random.normal(ks[4], (SLOW_C + FAST_C, NUM_CLASSES), jnp.float32),
        "b_head": scale * jax.random.normal(ks[5], (1, NUM_CLASSES), jnp.float32),
    }


def _reference(slow, fast, params):
    """Plain-JAX reference in the original conv-then-pool, concat-then-head order."""
    def pathway(x, w, b):
        B, C, T, H, W = x.shape
        rows = jnp.transpose(x, (0, 2, 3, 4, 1)).reshape(B, T * H * W, C)
        feat = jnp.einsum("brc,cd->brd", rows, w,
                          precision=jax.lax.Precision.HIGHEST) + b
        return jnp.mean(feat, axis=1)

    sf = pathway(slow, params["w_slow"], params["b_slow"])
    ff = pathway(fast, params["w_fast"], params["b_fast"])
    feat = jnp.concatenate([sf, ff], axis=1)
    logits = jnp.dot(feat, params["w_head"],
                     precision=jax.lax.Precision.HIGHEST) + params["b_head"]
    return jax.nn.softmax(logits, axis=1)


if __name__ == "__main__":
    key = jax.random.PRNGKey(0)
    k_p, k_s, k_f = jax.random.split(key, 3)

    params = init_params(k_p)
    fused = jax.block_until_ready(fuse_params(params))     # one-time weight prep

    # SlowFast input is a list of two clips: slow (T=2) and fast (T=8), NCTHW.
    B, H, W = 2, 16, 16
    slow = jax.random.normal(k_s, (B, 3, 2, H, W), jnp.float32)
    fast = jax.random.normal(k_f, (B, 3, 8, H, W), jnp.float32)

    # Small tile budget to force the multi-step streaming reduce at these toy shapes
    # (slow tile = 128 lanes, fast tile = 512 lanes -> 4 reduction steps per batch row).
    probs = my_slowfast_forward(slow, fast, fused, max_tile_bytes=16 * 1024)
    probs = jax.block_until_ready(probs)

    assert probs.shape == (B, NUM_CLASSES)
    # approx reciprocal in the softmax epilogue -> relaxed tolerances
    assert jnp.allclose(jnp.sum(probs, axis=1), 1.0, atol=5e-3)

    ref = _reference(slow, fast, params)
    assert jnp.allclose(probs, ref, atol=5e-3), (probs, ref)

    print("KERNEL_OK")
</pallas_src>

<mosaic_0001>
module attributes {stable_mosaic.version = 11 : i64} {
  func.func @kernel(%arg0: i32, %arg1: i32, %arg2: memref<1x3x128xf32, #tpu.memory_space<vmem>>, %arg3: memref<1x3x512xf32, #tpu.memory_space<vmem>>, %arg4: memref<3x128xf32, #tpu.memory_space<vmem>>, %arg5: memref<3x128xf32, #tpu.memory_space<vmem>>, %arg6: memref<1x128xf32, #tpu.memory_space<vmem>>, %arg7: memref<1x1x128xf32, #tpu.memory_space<vmem>>, %arg8: memref<1x3x128xf32, #tpu.memory_space<vmem>>, %arg9: memref<1x3x128xf32, #tpu.memory_space<vmem>>) attributes {dimension_semantics = [#tpu.dimension_semantics<parallel>, #tpu.dimension_semantics<arbitrary>], iteration_bounds = array<i64: 2, 4>, scalar_prefetch = 0 : i64, scratch_operands = 2 : i64, tpu.core_type = #tpu.core_type<tc>, window_params = [{transform_indices = @transform_0, window_bounds = array<i64: 1, 3, 128>}, {transform_indices = @transform_1, window_bounds = array<i64: 1, 3, 512>}, {pipeline_mode = #tpu.pipeline_mode<synchronous>, transform_indices = @transform_2, window_bounds = array<i64: 3, 128>}, {pipeline_mode = #tpu.pipeline_mode<synchronous>, transform_indices = @transform_3, window_bounds = array<i64: 3, 128>}, {pipeline_mode = #tpu.pipeline_mode<synchronous>, transform_indices = @transform_4, window_bounds = array<i64: 1, 128>}, {transform_indices = @transform_5, window_bounds = array<i64: 1, 1, 128>}]} {
    %c0_i32 = arith.constant 0 : i32
    %0 = arith.cmpi eq, %arg1, %c0_i32 : i32
    %1 = arith.extui %0 : i1 to i32
    %c0_i32_0 = arith.constant 0 : i32
    %2 = arith.cmpi ne, %1, %c0_i32_0 : i32
    scf.if %2 {
      %cst = arith.constant 0.000000e+00 : f32
      %21 = vector.broadcast %cst : f32 to vector<1x3x128xf32>
      %c0_19 = arith.constant 0 : index
      %c0_20 = arith.constant 0 : index
      %c0_21 = arith.constant 0 : index
      %22 = vector.load %arg8[%c0_19, %c0_20, %c0_21] : memref<1x3x128xf32, #tpu.memory_space<vmem>>, vector<1x3x128xf32>
      tpu.vector_store %arg8[%c0_19, %c0_20, %c0_21], %21 {strides = array<i32>} : memref<1x3x128xf32, #tpu.memory_space<vmem>>, vector<1x3x128xf32>,
      %cst_22 = arith.constant 0.000000e+00 : f32
      %23 = vector.broadcast %cst_22 : f32 to vector<1x3x128xf32>
      %c0_23 = arith.constant 0 : index
      %c0_24 = arith.constant 0 : index
      %c0_25 = arith.constant 0 : index
      %24 = vector.load %arg9[%c0_23, %c0_24, %c0_25] : memref<1x3x128xf32, #tpu.memory_space<vmem>>, vector<1x3x128xf32>
      tpu.vector_store %arg9[%c0_23, %c0_24, %c0_25], %23 {strides = array<i32>} : memref<1x3x128xf32, #tpu.memory_space<vmem>>, vector<1x3x128xf32>,
    } else {
    }
    %c0 = arith.constant 0 : index
    %c0_1 = arith.constant 0 : index
    %c0_2 = arith.constant 0 : index
    %3 = vector.load %arg8[%c0, %c0_1, %c0_2] : memref<1x3x128xf32, #tpu.memory_space<vmem>>, vector<1x3x128xf32>
    %c0_3 = arith.constant 0 : index
    %c0_4 = arith.constant 0 : index
    %c0_5 = arith.constant 0 : index
    %4 = vector.load %arg2[%c0_3, %c0_4, %c0_5] : memref<1x3x128xf32, #tpu.memory_space<vmem>>, vector<1x3x128xf32>
    %5 = arith.addf %3, %4 : vector<1x3x128xf32>
    %c0_6 = arith.constant 0 : index
    %c0_7 = arith.constant 0 : index
    %c0_8 = arith.constant 0 : index
    %6 = vector.load %arg8[%c0_6, %c0_7, %c0_8] : memref<1x3x128xf32, #tpu.memory_space<vmem>>, vector<1x3x128xf32>
    tpu.vector_store %arg8[%c0_6, %c0_7, %c0_8], %5 {strides = array<i32>} : memref<1x3x128xf32, #tpu.memory_space<vmem>>, vector<1x3x128xf32>,
    %c0_9 = arith.constant 0 : index
    %c0_10 = arith.constant 0 : index
    %c0_11 = arith.constant 0 : index
    %7 = vector.load %arg9[%c0_9, %c0_10, %c0_11] : memref<1x3x128xf32, #tpu.memory_space<vmem>>, vector<1x3x128xf32>
    %c0_12 = arith.constant 0 : index
    %c0_13 = arith.constant 0 : index
    %c0_14 = arith.constant 0 : index
    %8 = vector.load %arg3[%c0_12, %c0_13, %c0_14] : memref<1x3x512xf32, #tpu.memory_space<vmem>>, vector<1x3x512xf32>
    %9 = vector.extract_strided_slice %8 {offsets = [0, 0, 0], sizes = [1, 3, 128], strides = [1, 1, 1]} : vector<1x3x512xf32> to vector<1x3x128xf32>
    %10 = arith.addf %7, %9 : vector<1x3x128xf32>
    %11 = vector.extract_strided_slice %8 {offsets = [0, 0, 128], sizes = [1, 3, 128], strides = [1, 1, 1]} : vector<1x3x512xf32> to vector<1x3x128xf32>
    %12 = arith.addf %10, %11 : vector<1x3x128xf32>
    %13 = vector.extract_strided_slice %8 {offsets = [0, 0, 256], sizes = [1, 3, 128], strides = [1, 1, 1]} : vector<1x3x512xf32> to vector<1x3x128xf32>
    %14 = arith.addf %12, %13 : vector<1x3x128xf32>
    %15 = vector.extract_strided_slice %8 {offsets = [0, 0, 384], sizes = [1, 3, 128], strides = [1, 1, 1]} : vector<1x3x512xf32> to vector<1x3x128xf32>
    %16 = arith.addf %14, %15 : vector<1x3x128xf32>
    %c0_15 = arith.constant 0 : index
    %c0_16 = arith.constant 0 : index
    %c0_17 = arith.constant 0 : index
    %17 = vector.load %arg9[%c0_15, %c0_16, %c0_17] : memref<1x3x128xf32, #tpu.memory_space<vmem>>, vector<1x3x128xf32>
    tpu.vector_store %arg9[%c0_15, %c0_16, %c0_17], %16 {strides = array<i32>} : memref<1x3x128xf32, #tpu.memory_space<vmem>>, vector<1x3x128xf32>,
    %c3_i32 = arith.constant 3 : i32
    %18 = arith.cmpi eq, %arg1, %c3_i32 : i32
    %19 = arith.extui %18 : i1 to i32
    %c0_i32_18 = arith.constant 0 : i32
    %20 = arith.cmpi ne, %19, %c0_i32_18 : i32
    scf.if %20 {
      %c0_19 = arith.constant 0 : index
      %c0_20 = arith.constant 0 : index
      %c0_21 = arith.constant 0 : index
      %21 = vector.load %arg8[%c0_19, %c0_20, %c0_21] : memref<1x3x128xf32, #tpu.memory_space<vmem>>, vector<1x3x128xf32>
      %cst = arith.constant dense<0.000000e+00> : vector<1x3xf32>
      %22 = vector.multi_reduction <add>, %21, %cst [2] : vector<1x3x128xf32> to vector<1x3xf32>
      %cst_22 = arith.constant 0.001953125 : f32
      %23 = vector.broadcast %cst_22 : f32 to vector<1x3xf32>
      %24 = arith.mulf %22, %23 : vector<1x3xf32>
      %c0_23 = arith.constant 0 : index
      %c0_24 = arith.constant 0 : index
      %c0_25 = arith.constant 0 : index
      %25 = vector.load %arg9[%c0_23, %c0_24, %c0_25] : memref<1x3x128xf32, #tpu.memory_space<vmem>>, vector<1x3x128xf32>
      %cst_26 = arith.constant dense<0.000000e+00> : vector<1x3xf32>
      %26 = vector.multi_reduction <add>, %25, %cst_26 [2] : vector<1x3x128xf32> to vector<1x3xf32>
      %cst_27 = arith.constant 4.8828125E-4 : f32
      %27 = vector.broadcast %cst_27 : f32 to vector<1x3xf32>
      %28 = arith.mulf %26, %27 : vector<1x3xf32>
      %c0_28 = arith.constant 0 : index
      %c0_29 = arith.constant 0 : index
      %29 = vector.load %arg4[%c0_28, %c0_29] : memref<3x128xf32, #tpu.memory_space<vmem>>, vector<3x128xf32>
      %cst_30 = arith.constant dense<0.000000e+00> : vector<1x128xf32>
      %30 = tpu.matmul %24, %29, %cst_30 {dimension_numbers = #tpu.dot_dimension_numbers<[1], [0], [0], [1], [0, 0, 1, 1], [], []>} : vector<1x3xf32>, vector<3x128xf32>, vector<1x128xf32> -> vector<1x128xf32>
      %c0_31 = arith.constant 0 : index
      %c0_32 = arith.constant 0 : index
      %31 = vector.load %arg5[%c0_31, %c0_32] : memref<3x128xf32, #tpu.memory_space<vmem>>, vector<3x128xf32>
      %cst_33 = arith.constant dense<0.000000e+00> : vector<1x128xf32>
      %32 = tpu.matmul %28, %31, %cst_33 {dimension_numbers = #tpu.dot_dimension_numbers<[1], [0], [0], [1], [0, 0, 1, 1], [], []>} : vector<1x3xf32>, vector<3x128xf32>, vector<1x128xf32> -> vector<1x128xf32>
      %33 = arith.addf %30, %32 : vector<1x128xf32>
      %c0_34 = arith.constant 0 : index
      %c0_35 = arith.constant 0 : index
      %34 = vector.load %arg6[%c0_34, %c0_35] : memref<1x128xf32, #tpu.memory_space<vmem>>, vector<1x128xf32>
      %35 = arith.addf %33, %34 : vector<1x128xf32>
      %cst_36 = arith.constant dense<0xFF800000> : vector<1xf32>
      %36 = vector.multi_reduction <maximumf>, %35, %cst_36 [1] : vector<1x128xf32> to vector<1xf32>
      %37 = vector.shape_cast %36 : vector<1xf32> to vector<1x1xf32>
      %38 = vector.broadcast %37 : vector<1x1xf32> to vector<1x128xf32>
      %39 = arith.subf %35, %38 : vector<1x128xf32>
      %40 = math.exp %39 : vector<1x128xf32>
      %cst_37 = arith.constant dense<0.000000e+00> : vector<1xf32>
      %41 = vector.multi_reduction <add>, %40, %cst_37 [1] : vector<1x128xf32> to vector<1xf32>
      %42 = vector.shape_cast %41 : vector<1xf32> to vector<1x1xf32>
      %43 = tpu.reciprocal %42 {approx = true} : vector<1x1xf32> -> vector<1x1xf32>
      %44 = vector.broadcast %43 : vector<1x1xf32> to vector<1x128xf32>
      %45 = arith.mulf %40, %44 : vector<1x128xf32>
      %c0_38 = arith.constant 0 : index
      %c0_39 = arith.constant 0 : index
      %c0_40 = arith.constant 0 : index
      %46 = vector.load %arg7[%c0_38, %c0_39, %c0_40] : memref<1x1x128xf32, #tpu.memory_space<vmem>>, vector<1x1x128xf32>
      %47 = vector.shape_cast %46 : vector<1x1x128xf32> to vector<1x128xf32>
      %48 = vector.shape_cast %45 : vector<1x128xf32> to vector<1x1x128xf32>
      tpu.vector_store %arg7[%c0_38, %c0_39, %c0_40], %48 {strides = array<i32>} : memref<1x1x128xf32, #tpu.memory_space<vmem>>, vector<1x1x128xf32>,
    } else {
    }
    return
  }
  func.func @transform_0(%arg0: i32, %arg1: i32) -> (i32, i32, i32) {
    %c0_i32 = arith.constant 0 : i32
    %c0_i32_0 = arith.constant 0 : i32
    return %arg0, %c0_i32, %arg1 : i32, i32, i32
  }
  func.func @transform_1(%arg0: i32, %arg1: i32) -> (i32, i32, i32) {
    %c0_i32 = arith.constant 0 : i32
    %c0_i32_0 = arith.constant 0 : i32
    return %arg0, %c0_i32, %arg1 : i32, i32, i32
  }
  func.func @transform_2(%arg0: i32, %arg1: i32) -> (i32, i32) {
    %c0_i32 = arith.constant 0 : i32
    %c0_i32_0 = arith.constant 0 : i32
    %c0_i32_1 = arith.constant 0 : i32
    return %c0_i32, %c0_i32_0 : i32, i32
  }
  func.func @transform_3(%arg0: i32, %arg1: i32) -> (i32, i32) {
    %c0_i32 = arith.constant 0 : i32
    %c0_i32_0 = arith.constant 0 : i32
    %c0_i32_1 = arith.constant 0 : i32
    return %c0_i32, %c0_i32_0 : i32, i32
  }
  func.func @transform_4(%arg0: i32, %arg1: i32) -> (i32, i32) {
    %c0_i32 = arith.constant 0 : i32
    %c0_i32_0 = arith.constant 0 : i32
    %c0_i32_1 = arith.constant 0 : i32
    return %c0_i32, %c0_i32_0 : i32, i32
  }
  func.func @transform_5(%arg0: i32, %arg1: i32) -> (i32, i32, i32) {
    %c0_i32 = arith.constant 0 : i32
    %c0_i32_0 = arith.constant 0 : i32
    %c0_i32_1 = arith.constant 0 : i32
    return %arg0, %c0_i32, %c0_i32_0 : i32, i32, i32
  }
}

</mosaic_0001>

<llo_original>
// kernel: tpu_custom_call.1
$region0: #{tpu_custom_call.1}
  #allocation0 [shape = 'u32[]', space=smem, size = 0x4, offset = 0x4, fixed_abs, tag = 'smem constant byte address 0x4 - core index']
  #allocation1 [shape = 'u32[144,128]{1,0:T(1,128)}', space=vmem, size = 0x12000, scoped, tag = 'internal scratch']
  #allocation2 [shape = 'f32[1,3,128]{2,1,0:T(4,128)}', space=vmem, size = 0x800, scoped, tag = 'scratch operand']
  #allocation3 [shape = 'f32[1,3,128]{2,1,0:T(4,128)}', space=vmem, size = 0x800, scoped, tag = 'scratch operand']
  %s0 = inlined_call_operand.vmem [shape: f32[2,3,512], index: 0, kind: input, shape index: {}]
  %s1 = inlined_call_operand.vmem [shape: f32[2,3,2048], index: 1, kind: input, shape index: {}]
  %s2 = inlined_call_operand.vmem [shape: f32[3,128], index: 2, kind: input, shape index: {}]
  %s3 = inlined_call_operand.vmem [shape: f32[3,128], index: 3, kind: input, shape index: {}]
  %s4 = inlined_call_operand.vmem [shape: f32[1,128], index: 4, kind: input, shape index: {}]
  %s5 = inlined_call_operand.hbm [shape: f32[2,1,128], index: 5, kind: output, shape index: {}]
  %s6 = sld [smem:[#allocation0]]
  $region61: #{tpu_custom_call.1} parent=0
    _
  %s8 = ssub.s32 1, %s6
  %s9 = scalar_select 0, %s8, %s6
  $region1: #{tpu_custom_call.1} parent=0
    #allocation4 [shape = 'u8[1024]{0}', space=vmem, size = 0x400, scoped, tag = 'output window, operand 0']
    #allocation5 [shape = 's32[2]{0}', space=sflag, size = 0x8, scoped, tag = 'scoped memory for tpu_custom_call.1']
    %10 = vsyncpa [#allocation5], 0
    %s11 = scalar_lea.sflag [#allocation5], 1
    %12 = vsyncpa %s11, 0
    loop: start=0, step=1, limit=10
    $region2: #{tpu_custom_call.1} parent=1 // loop_pre_header
      _
    $region3: #{tpu_custom_call.1} parent=1 // loop_header
      %s14 = sphi 0, %s18
      %p15 = scmp.ge.s32.totalorder %s14, 10
      %s21 = sphi 0, %s33
      %s22 = sphi 0, %s29
      %s23 = sphi 0, %s21
      %s24 = sphi 0, %s22
      %s25 = sphi 0, %s23
      %s26 = sphi 0, %s24
      %s38 = sphi 0, %s40
      %s41 = sphi 0, %s38
      %s42 = sphi 0, %s41
      %s58 = sphi 0, %s42
      %s66 = sphi 0, %s68
      %s69 = sphi 0, %s66
      %s70 = sphi 0, %s69
      %s86 = sphi 0, %s70
      %s90 = sphi 0, %s90
      %s92 = sphi 0, %s90
      %s93 = sphi 0, %s92
      %s107 = sphi 0, %s93
      %s111 = sphi 0, %s111
      %s113 = sphi 0, %s111
      %s114 = sphi 0, %s113
      %s128 = sphi 0, %s114
      %s132 = sphi 0, %s132
      %s134 = sphi 0, %s132
      %s135 = sphi 0, %s134
      %s149 = sphi 0, %s135
      %s155 = sphi 0, %s157
      %s158 = sphi 0, %s155
      %s159 = sphi 0, %s158
      %s175 = sphi 0, %s159
    $region4: #{tpu_custom_call.1} parent=1 // loop_header_branch
      %17 = sbr.rel (%p15) target = $region8
    $region5: #{tpu_custom_call.1} parent=1 // loop_body
      %s19 = ssub.s32 %s14, 1
      %s20 = ssub.s32 %s14, 2
      %s27 = sadd.s32 1, %s22
      %p28 = scmp.ge.s32.totalorder %s27, 4
      %s29 = scalar_select %p28, 0, %s27
      %s30 = sadd.s32 1, %s21
      %s31 = scalar_select %p28, %s30, %s21
      %p32 = scmp.ge.s32.totalorder %s31, 2
      %s33 = scalar_select %p32, 0, %s31
      %s34 = ssub.s32 %s21, %s33
      %s35 = ssub.s32 %s22, %s29
      %s36 = sor.u32 %s34, %s35
      %p37 = scmp.eq.s32.totalorder %s36, 0
      %s39 = sadd.s32 %s38, 1
      %s40 = scalar_select %p37, %s38, %s39
      %p43 = pneg %p37
      %p44 = scmp.eq.s32.totalorder %s14, 7
      %p45 = por %p43, %p44
      %p46 = scmp.ne.s32.totalorder %s38, %s41
      %p47 = scmp.eq.s32.totalorder %s14, 0
      %p48 = por %p46, %p47
      %p49 = scmp.ne.s32.totalorder %s38, %s41
      %p50 = scmp.eq.s32.totalorder %s19, 7
      %p51 = por %p49, %p50
      %p52 = scmp.ne.s32.totalorder %s41, %s42
      %p53 = scmp.eq.s32.totalorder %s19, 0
      %p54 = por %p52, %p53
      %p55 = scmp.ne.s32.totalorder %s41, %s42
      %p56 = scmp.eq.s32.totalorder %s20, 7
      %p57 = por %p55, %p56
      %p59 = scmp.ne.s32.totalorder %s42, %s58
      %p60 = scmp.eq.s32.totalorder %s20, 0
      %p61 = por %p59, %p60
      %s62 = ssub.s32 %s21, %s33
      %s63 = ssub.s32 %s22, %s29
      %s64 = sor.u32 %s62, %s63
      %p65 = scmp.eq.s32.totalorder %s64, 0
      %s67 = sadd.s32 %s66, 1
      %s68 = scalar_select %p65, %s66, %s67
      %p71 = pneg %p65
      %p72 = scmp.eq.s32.totalorder %s14, 7
      %p73 = por %p71, %p72
      %p74 = scmp.ne.s32.totalorder %s66, %s69
      %p75 = scmp.eq.s32.totalorder %s14, 0
      %p76 = por %p74, %p75
      %p77 = scmp.ne.s32.totalorder %s66, %s69
      %p78 = scmp.eq.s32.totalorder %s19, 7
      %p79 = por %p77, %p78
      %p80 = scmp.ne.s32.totalorder %s69, %s70
      %p81 = scmp.eq.s32.totalorder %s19, 0
      %p82 = por %p80, %p81
      %p83 = scmp.ne.s32.totalorder %s69, %s70
      %p84 = scmp.eq.s32.totalorder %s20, 7
      %p85 = por %p83, %p84
      %p87 = scmp.ne.s32.totalorder %s70, %s86
      %p88 = scmp.eq.s32.totalorder %s20, 0
      %p89 = por %p87, %p88
      %s91 = sadd.s32 %s90, 1
      %p94 = scmp.eq.s32.totalorder %s14, 7
      %p95 = scmp.ne.s32.totalorder %s90, %s92
      %p96 = scmp.eq.s32.totalorder %s14, 0
      %p97 = por %p95, %p96
      %p98 = scmp.ne.s32.totalorder %s90, %s92
      %p99 = scmp.eq.s32.totalorder %s19, 7
      %p100 = por %p98, %p99
      %p101 = scmp.ne.s32.totalorder %s92, %s93
      %p102 = scmp.eq.s32.totalorder %s19, 0
      %p103 = por %p101, %p102
      %p104 = scmp.ne.s32.totalorder %s92, %s93
      %p105 = scmp.eq.s32.totalorder %s20, 7
      %p106 = por %p104, %p105
      %p108 = scmp.ne.s32.totalorder %s93, %s107
      %p109 = scmp.eq.s32.totalorder %s20, 0
      %p110 = por %p108, %p109
      %s112 = sadd.s32 %s111, 1
      %p115 = scmp.eq.s32.totalorder %s14, 7
      %p116 = scmp.ne.s32.totalorder %s111, %s113
      %p117 = scmp.eq.s32.totalorder %s14, 0
      %p118 = por %p116, %p117
      %p119 = scmp.ne.s32.totalorder %s111, %s113
      %p120 = scmp.eq.s32.totalorder %s19, 7
      %p121 = por %p119, %p120
      %p122 = scmp.ne.s32.totalorder %s113, %s114
      %p123 = scmp.eq.s32.totalorder %s19, 0
      %p124 = por %p122, %p123
      %p125 = scmp.ne.s32.totalorder %s113, %s114
      %p126 = scmp.eq.s32.totalorder %s20, 7
      %p127 = por %p125, %p126
      %p129 = scmp.ne.s32.totalorder %s114, %s128
      %p130 = scmp.eq.s32.totalorder %s20, 0
      %p131 = por %p129, %p130
      %s133 = sadd.s32 %s132, 1
      %p136 = scmp.eq.s32.totalorder %s14, 7
      %p137 = scmp.ne.s32.totalorder %s132, %s134
      %p138 = scmp.eq.s32.totalorder %s14, 0
      %p139 = por %p137, %p138
      %p140 = scmp.ne.s32.totalorder %s132, %s134
      %p141 = scmp.eq.s32.totalorder %s19, 7
      %p142 = por %p140, %p141
      %p143 = scmp.ne.s32.totalorder %s134, %s135
      %p144 = scmp.eq.s32.totalorder %s19, 0
      %p145 = por %p143, %p144
      %p146 = scmp.ne.s32.totalorder %s134, %s135
      %p147 = scmp.eq.s32.totalorder %s20, 7
      %p148 = por %p146, %p147
      %p150 = scmp.ne.s32.totalorder %s135, %s149
      %p151 = scmp.eq.s32.totalorder %s20, 0
      %p152 = por %p150, %p151
      %s153 = ssub.s32 %s21, %s33
      %p154 = scmp.eq.s32.totalorder %s153, 0
      %s156 = sadd.s32 %s155, 1
      %s157 = scalar_select %p154, %s155, %s156
      %p160 = pneg %p154
      %p161 = scmp.eq.s32.totalorder %s14, 7
      %p162 = por %p160, %p161
      %p163 = scmp.ne.s32.totalorder %s155, %s158
      %p164 = scmp.eq.s32.totalorder %s14, 0
      %p165 = por %p163, %p164
      %p166 = scmp.ne.s32.totalorder %s155, %s158
      %p167 = scmp.eq.s32.totalorder %s19, 7
      %p168 = por %p166, %p167
      %p169 = scmp.ne.s32.totalorder %s158, %s159
      %p170 = scmp.eq.s32.totalorder %s19, 0
      %p171 = por %p169, %p170
      %p172 = scmp.ne.s32.totalorder %s158, %s159
      %p173 = scmp.eq.s32.totalorder %s20, 7
      %p174 = por %p172, %p173
      %p176 = scmp.ne.s32.totalorder %s159, %s175
      %p177 = scmp.eq.s32.totalorder %s20, 0
      %p178 = por %p176, %p177
      %p179 = scmp.le.s32.totalorder 1, %s14
      %p180 = scmp.lt.s32.totalorder %s14, 9
      %p181 = pnand %p179, %p180
      %p182 = pneg %p181
      // Predicated region
      $region9: #{tpu_custom_call.1} parent=5 // pred_check
        _
      $region10: #{tpu_custom_call.1} parent=5 // pred_check_branch
        %184 = sbr.rel (%p181) target = $region12
      $region11: #{tpu_custom_call.1} parent=5 // pred_region
        %s185 = ssub.s32 %s14, 1
        // Predicated region
        $region13: #{tpu_custom_call.1} parent=11 // pred_check
          %p186 = pneg %p103
        $region14: #{tpu_custom_call.1} parent=11 // pred_check_branch
          %188 = sbr.rel (%p186) target = $region16
        $region15: #{tpu_custom_call.1} parent=11 // pred_region
          _
        $region16: #{tpu_custom_call.1} parent=11 // pred_fallthru
          _
        // Predicated region
        $region17: #{tpu_custom_call.1} parent=11 // pred_check
          %p189 = pneg %p124
        $region18: #{tpu_custom_call.1} parent=11 // pred_check_branch
          %191 = sbr.rel (%p189) target = $region20
        $region19: #{tpu_custom_call.1} parent=11 // pred_region
          _
        $region20: #{tpu_custom_call.1} parent=11 // pred_fallthru
          _
        // Predicated region
        $region21: #{tpu_custom_call.1} parent=11 // pred_check
          %p192 = pneg %p145
        $region22: #{tpu_custom_call.1} parent=11 // pred_check_branch
          %194 = sbr.rel (%p192) target = $region24
        $region23: #{tpu_custom_call.1} parent=11 // pred_region
          _
        $region24: #{tpu_custom_call.1} parent=11 // pred_fallthru
          _
      $region12: #{tpu_custom_call.1} parent=5 // pred_fallthru
        _
      %p195 = scmp.lt.s32.totalorder %s14, 8
      // Predicated region
      $region25: #{tpu_custom_call.1} parent=5 // pred_check
        %p196 = pneg %p195
      $region26: #{tpu_custom_call.1} parent=5 // pred_check_branch
        %198 = sbr.rel (%p196) target = $region28
      $region27: #{tpu_custom_call.1} parent=5 // pred_region
        // Predicated region
        $region29: #{tpu_custom_call.1} parent=27 // pred_check
          %p199 = pneg %p48
        $region30: #{tpu_custom_call.1} parent=27 // pred_check_branch
          %201 = sbr.rel (%p199) target = $region32
        $region31: #{tpu_custom_call.1} parent=27 // pred_region
          %p202 = scmp.lt.s32.totalorder %s21, 1
          %s203 = scalar_select %p202, %s21, 1
          %p204 = scmp.lt.s32.totalorder %s22, 3
          %s205 = scalar_select %p204, %s22, 3
          %s206 = smul.addr %s203, 4
          %s207 = sadd.s32 %s205, %s206
          %s208 = smul.addr %s207, 4
          %s209 = scalar_lea.vmem %s0, %s208
        $region32: #{tpu_custom_call.1} parent=27 // pred_fallthru
          _
        // Predicated region
        $region33: #{tpu_custom_call.1} parent=27 // pred_check
          %p210 = pneg %p76
        $region34: #{tpu_custom_call.1} parent=27 // pred_check_branch
          %212 = sbr.rel (%p210) target = $region36
        $region35: #{tpu_custom_call.1} parent=27 // pred_region
          %s213 = smul.u32 4, %s22
          %p214 = scmp.lt.s32.totalorder %s21, 1
          %s215 = scalar_select %p214, %s21, 1
          %p216 = scmp.lt.s32.totalorder %s213, 15
          %s217 = scalar_select %p216, %s213, 15
          %s218 = smul.addr %s215, 16
          %s219 = sadd.s32 %s217, %s218
          %s220 = smul.addr %s219, 4
          %s221 = scalar_lea.vmem %s1, %s220
          %s222 = smul.u32 4, %s22
        $region36: #{tpu_custom_call.1} parent=27 // pred_fallthru
          _
      $region28: #{tpu_custom_call.1} parent=5 // pred_fallthru
        _
      %p223 = scmp.le.s32.totalorder 1, %s14
      %p224 = scmp.lt.s32.totalorder %s14, 9
      %p225 = pnand %p223, %p224
      %p226 = pneg %p225
      // Predicated region
      $region37: #{tpu_custom_call.1} parent=5 // pred_check
        _
      $region38: #{tpu_custom_call.1} parent=5 // pred_check_branch
        %228 = sbr.rel (%p225) target = $region40
      $region39: #{tpu_custom_call.1} parent=5 // pred_region
        %s229 = ssub.s32 %s14, 1
        %p230 = scmp.lt.s32.totalorder %s23, 1
        %s231 = scalar_select %p230, %s23, 1
        %p232 = scmp.lt.s32.totalorder %s24, 3
        %s233 = scalar_select %p232, %s24, 3
        %s234 = smul.addr %s231, 4
        %s235 = sadd.s32 %s233, %s234
        %s236 = smul.addr %s235, 4
        %s237 = scalar_lea.vmem %s0, %s236
        %p238 = pneg %p54
        %p239 = pneg %p51
        %s240 = smul.u32 4, %s24
        %p241 = scmp.lt.s32.totalorder %s23, 1
        %s242 = scalar_select %p241, %s23, 1
        %p243 = scmp.lt.s32.totalorder %s240, 15
        %s244 = scalar_select %p243, %s240, 15
        %s245 = smul.addr %s242, 16
        %s246 = sadd.s32 %s244, %s245
        %s247 = smul.addr %s246, 4
        %s248 = scalar_lea.vmem %s1, %s247
        %p249 = pneg %p82
        %p250 = pneg %p79
        %p251 = pneg %p103
        %p252 = pneg %p100
        %p253 = pneg %p124
        %p254 = pneg %p121
        %p255 = pneg %p145
        %p256 = pneg %p142
        %p257 = pneg %p171
        %p258 = pneg %p168
        %s259 = sand.u32 %s158, 1
        %s260 = scalar_lea.sflag [#allocation5], %s259
        %s261 = sand.u32 %s158, 1
        %s262 = scalar_lea.vmem [#allocation4], %s261
        %p263 = scmp.lt.s32.totalorder %s23, 1
        %s264 = scalar_select %p263, %s23, 1
        %p265 = scmp.lt.s32.totalorder %s24, 3
        %s266 = scalar_select %p265, %s24, 3
        %s267 = smul.addr %s264, 4
        %s268 = sadd.s32 %s266, %s267
        %s269 = smul.addr %s268, 4
        %s270 = scalar_lea.vmem %s0, %s269
        %s271 = smul.u32 4, %s24
        %p272 = scmp.lt.s32.totalorder %s23, 1
        %s273 = scalar_select %p272, %s23, 1
        %p274 = scmp.lt.s32.totalorder %s271, 15
        %s275 = scalar_select %p274, %s271, 15
        %s276 = smul.addr %s273, 16
        %s277 = sadd.s32 %s275, %s276
        %s278 = smul.addr %s277, 4
        %s279 = scalar_lea.vmem %s1, %s278
        %s280 = smul.u32 4, %s24
        %p281 = scmp.eq.s32.totalorder %s24, 0
        // Predicated region
        $region41: #{tpu_custom_call.1} parent=39 // pred_check
          %p282 = pneg %p281
        $region42: #{tpu_custom_call.1} parent=39 // pred_check_branch
          %284 = sbr.rel (%p282) target = $region44
        $region43: #{tpu_custom_call.1} parent=39 // pred_region
          %285 = vst [vmem:[#allocation2] sm:$0x7] 0.0
          %286 = vst [vmem:[#allocation3] sm:$0x7] 0.0
        $region44: #{tpu_custom_call.1} parent=39 // pred_fallthru
          _
        %v287 = vld [vmem:[#allocation2] sm:$0x7]
        %v288 = vld [vmem:[%s270] sm:$0x7]
        %v289 = vadd.f32 %v287, %v288
        %290 = vst [vmem:[#allocation2] sm:$0x7] %v289
        %v291 = vld [vmem:[#allocation3] sm:$0x7]
        %v292 = vld [vmem:[%s279] sm:$0x77]
        %v293 = vld [vmem:[%s279 + $0x8] sm:$0x77]
        %v294 = vadd.f32 %v291, %v292
        %v296 = vcombine.high %v292, %v292
        %v298 = vadd.f32 %v294, %v296
        %v299 = vadd.f32 %v298, %v293
        %v301 = vcombine.high %v293, %v293
        %v303 = vadd.f32 %v299, %v301
        %304 = vst [vmem:[#allocation3] sm:$0x7] %v303
        %p305 = scmp.eq.s32.totalorder %s24, 3
        // Predicated region
        $region45: #{tpu_custom_call.1} parent=39 // pred_check
          %p306 = pneg %p305
        $region46: #{tpu_custom_call.1} parent=39 // pred_check_branch
          %308 = sbr.rel (%p306) target = $region48
        $region47: #{tpu_custom_call.1} parent=39 // pred_region
          %v309 = vld [vmem:[#allocation2] sm:$0x7]
          %vm310 = vcmask 1042432
          %v311 = vsel %vm310, %v309, 0.0
          %312 = vadd.xlane.f32.xlu0 %v311
          %v313 = vpop.xlane.xlu0 %312
          %v314 = vmul.f32 %v313, 0.001953125
          %v315 = vld [vmem:[#allocation3] sm:$0x7]
          %v316 = vsel %vm310, %v315, 0.0
          %317 = vadd.xlane.f32.xlu0 %v316
          %v318 = vpop.xlane.xlu0 %317
          %v319 = vmul.f32 %v318, 0.00048828125
          %v320 = vld [vmem:[%s2] sm:$0x7]
          %v321 = vld [vmem:[%s3] sm:$0x7]
          %v323 = vlaneseq
          %v324 = vand.u32 %v323, 127
          %v325 = vlaneseq
          %v326 = vshrl.u32 %v325, 7
          %v327 = vsub.s32 %v324, %v326
          %v328 = vrot.slane %v319, %v327
          %vm329 = vcmask 23552
          %v330 = vsel %vm329, %v328, 0
          %v333 = vsel %vm310, %v321, 0
          %335 = vmatprep.subr.mxu0 0.0
          %336 = vmatpush1.msra.mxu0 %v333
          %337 = vmatprep.subr.mxu0 0.0
          %338 = vmatpush1.msra.mxu0 0.0
          %339 = vmatprep.subr.mxu0 0.0
          %340 = vmatpush1.msra.mxu0 0.0
          %341 = vmatprep.subr.mxu0 0.0
          %342 = vmatpush1.msra.mxu0 0.0
          %343 = vmatprep.subr.mxu0 0.0
          %344 = vmatpush1.msra.mxu0 0.0
          %345 = vmatprep.subr.mxu0 0.0
          %346 = vmatpush1.msra.mxu0 0.0
          %347 = vmatprep.subr.mxu0 0.0
          %348 = vmatpush1.msra.mxu0 0.0
          %349 = vmatprep.subr.mxu0 0.0
          %350 = vmatpush1.msra.mxu0 0.0
          %351 = vmatprep.subr.mxu0 0.0
          %352 = vmatpush1.msra.mxu0 0.0
          %353 = vmatprep.subr.mxu0 0.0
          %354 = vmatpush1.msra.mxu0 0.0
          %355 = vmatprep.subr.mxu0 0.0
          %356 = vmatpush1.msra.mxu0 0.0
          %357 = vmatprep.subr.mxu0 0.0
          %358 = vmatpush1.msra.mxu0 0.0
          %359 = vmatprep.subr.mxu0 0.0
          %360 = vmatpush1.msra.mxu0 0.0
          %361 = vmatprep.subr.mxu0 0.0
          %362 = vmatpush1.msra.mxu0 0.0
          %363 = vmatprep.subr.mxu0 0.0
          %364 = vmatpush1.msra.mxu0 0.0
          %365 = vmatprep.subr.mxu0 0.0
          %366 = vmatpush1.msra.mxu0 0.0
          %367 = vmatprep.subr.mxu0 0.0
          %368 = vmatpush1.msra.mxu0 0.0
          %369 = vmatprep.subr.mxu0 0.0
          %370 = vmatpush1.msra.mxu0 0.0
          %371 = vmatprep.subr.mxu0 0.0
          %372 = vmatpush1.msra.mxu0 0.0
          %373 = vmatprep.subr.mxu0 0.0
          %374 = vmatpush1.msra.mxu0 0.0
          %375 = vmatprep.subr.mxu0 0.0
          %376 = vmatpush1.msra.mxu0 0.0
          %377 = vmatprep.subr.mxu0 0.0
          %378 = vmatpush1.msra.mxu0 0.0
          %379 = vmatprep.subr.mxu0 0.0
          %380 = vmatpush1.msra.mxu0 0.0
          %381 = vmatprep.subr.mxu0 0.0
          %382 = vmatpush1.msra.mxu0 0.0
          %383 = vmatprep.subr.mxu0 0.0
          %384 = vmatpush1.msra.mxu0 0.0
          %385 = vmatprep.subr.mxu0 0.0
          %386 = vmatpush1.msra.mxu0 0.0
          %387 = vmatprep.subr.mxu0 0.0
          %388 = vmatpush1.msra.mxu0 0.0
          %389 = vmatprep.subr.mxu0 0.0
          %390 = vmatpush1.msra.mxu0 0.0
          %391 = vmatprep.subr.mxu0 0.0
          %392 = vmatpush1.msra.mxu0 0.0
          %393 = vmatprep.subr.mxu0 0.0
          %394 = vmatpush1.msra.mxu0 0.0
          %395 = vmatprep.subr.mxu0 0.0
          %396 = vmatpush1.msra.mxu0 0.0
          %397 = vmatprep.subr.mxu0 0.0
          %398 = vmatpush1.msra.mxu0 0.0
          %399 = vmatprep.mubr.f32.mxu0 0.0
          %400 = vmatmul.mubr.f32.gmra.mrb[0].mxu0 %v330
          %v401 = vpop.f32.mrb[0].mxu0
          %v402 = vadd.f32 0.0, %v401
          %v403 = vpop.f32.mrb[0].mxu0
          %404 = vdwg.mxu0
          %v406 = vlaneseq
          %v407 = vshrl.u32 %v406, 7
          %v408 = vsub.s32 %v324, %v407
          %v409 = vrot.slane %v314, %v408
          %v410 = vsel %vm329, %v409, 0
          %v413 = vsel %vm310, %v320, 0
          %415 = vmatprep.subr.mxu0 0.0
          %416 = vmatpush1.msra.mxu0 %v413
          %417 = vmatprep.subr.mxu0 0.0
          %418 = vmatpush1.msra.mxu0 0.0
          %419 = vmatprep.subr.mxu0 0.0
          %420 = vmatpush1.msra.mxu0 0.0
          %421 = vmatprep.subr.mxu0 0.0
          %422 = vmatpush1.msra.mxu0 0.0
          %423 = vmatprep.subr.mxu0 0.0
          %424 = vmatpush1.msra.mxu0 0.0
          %425 = vmatprep.subr.mxu0 0.0
          %426 = vmatpush1.msra.mxu0 0.0
          %427 = vmatprep.subr.mxu0 0.0
          %428 = vmatpush1.msra.mxu0 0.0
          %429 = vmatprep.subr.mxu0 0.0
          %430 = vmatpush1.msra.mxu0 0.0
          %431 = vmatprep.subr.mxu0 0.0
          %432 = vmatpush1.msra.mxu0 0.0
          %433 = vmatprep.subr.mxu0 0.0
          %434 = vmatpush1.msra.mxu0 0.0
          %435 = vmatprep.subr.mxu0 0.0
          %436 = vmatpush1.msra.mxu0 0.0
          %437 = vmatprep.subr.mxu0 0.0
          %438 = vmatpush1.msra.mxu0 0.0
          %439 = vmatprep.subr.mxu0 0.0
          %440 = vmatpush1.msra.mxu0 0.0
          %441 = vmatprep.subr.mxu0 0.0
          %442 = vmatpush1.msra.mxu0 0.0
          %443 = vmatprep.subr.mxu0 0.0
          %444 = vmatpush1.msra.mxu0 0.0
          %445 = vmatprep.subr.mxu0 0.0
          %446 = vmatpush1.msra.mxu0 0.0
          %447 = vmatprep.subr.mxu0 0.0
          %448 = vmatpush1.msra.mxu0 0.0
          %449 = vmatprep.subr.mxu0 0.0
          %450 = vmatpush1.msra.mxu0 0.0
          %451 = vmatprep.subr.mxu0 0.0
          %452 = vmatpush1.msra.mxu0 0.0
          %453 = vmatprep.subr.mxu0 0.0
          %454 = vmatpush1.msra.mxu0 0.0
          %455 = vmatprep.subr.mxu0 0.0
          %456 = vmatpush1.msra.mxu0 0.0
          %457 = vmatprep.subr.mxu0 0.0
          %458 = vmatpush1.msra.mxu0 0.0
          %459 = vmatprep.subr.mxu0 0.0
          %460 = vmatpush1.msra.mxu0 0.0
          %461 = vmatprep.subr.mxu0 0.0
          %462 = vmatpush1.msra.mxu0 0.0
          %463 = vmatprep.subr.mxu0 0.0
          %464 = vmatpush1.msra.mxu0 0.0
          %465 = vmatprep.subr.mxu0 0.0
          %466 = vmatpush1.msra.mxu0 0.0
          %467 = vmatprep.subr.mxu0 0.0
          %468 = vmatpush1.msra.mxu0 0.0
          %469 = vmatprep.subr.mxu0 0.0
          %470 = vmatpush1.msra.mxu0 0.0
          %471 = vmatprep.subr.mxu0 0.0
          %472 = vmatpush1.msra.mxu0 0.0
          %473 = vmatprep.subr.mxu0 0.0
          %474 = vmatpush1.msra.mxu0 0.0
          %475 = vmatprep.subr.mxu0 0.0
          %476 = vmatpush1.msra.mxu0 0.0
          %477 = vmatprep.subr.mxu0 0.0
          %478 = vmatpush1.msra.mxu0 0.0
          %479 = vmatprep.mubr.f32.mxu0 0.0
          %480 = vmatmul.mubr.f32.gmra.mrb[0].mxu0 %v410
          %v481 = vpop.f32.mrb[0].mxu0
          %v482 = vadd.f32 %v402, %v481
          %v483 = vpop.f32.mrb[0].mxu0
          %484 = vdwg.mxu0
          %v485 = vld [vmem:[%s4] sm:$0x1]
          %v486 = vadd.f32 %v482, %v485
          %vm487 = vcmask 1040384
          %v488 = vsel %vm487, %v486, -inf
          %489 = vmax.xlane.f32.xlu0 %v488
          %v490 = vpop.xlane.xlu0 %489
          %v491 = vsub.f32 %v486, %v490
          %v492 = vmul.f32 %v491, 1.442695
          %v493 = vpow.pop %v492
          %v494 = vsel %vm487, %v493, 0.0
          %495 = vadd.xlane.f32.xlu0 %v494
          %v496 = vpop.xlane.xlu0 %495
          %v497 = vrcp.pop %v496
          %v498 = vmul.f32 %v493, %v497
          %499 = vst [vmem:[%s262] sm:$0x1] %v498
        $region48: #{tpu_custom_call.1} parent=39 // pred_fallthru
          _
        %s500 = sand.u32 %s158, 1
        %s501 = scalar_lea.sflag [#allocation5], %s500
        %s502 = sand.u32 %s158, 1
        %s503 = scalar_lea.vmem [#allocation4], %s502
        // Predicated region
        $region49: #{tpu_custom_call.1} parent=39 // pred_check
          %p504 = pneg %p168
        $region50: #{tpu_custom_call.1} parent=39 // pred_check_branch
          %506 = sbr.rel (%p504) target = $region52
        $region51: #{tpu_custom_call.1} parent=39 // pred_region
          %s508 = ssub.s32 16, 16
          %509 = vsyncadd %s501, %s508
          %s510 = smul.addr %s23, 16
          %s511 = scalar_lea.hbm %s5, %s510
          %s513 = sshll.u32 %s503, 4
          %s514 = int_to_ptr.vmem [resolvable:$true] %s513
          %516 = dma.vmem_to_hbm [thread:$0]  %s514, 16, %s511, %s501
        $region52: #{tpu_custom_call.1} parent=39 // pred_fallthru
          _
      $region40: #{tpu_custom_call.1} parent=5 // pred_fallthru
        _
      %p517 = scmp.le.s32.totalorder 2, %s14
      // Predicated region
      $region53: #{tpu_custom_call.1} parent=5 // pred_check
        %p518 = pneg %p517
      $region54: #{tpu_custom_call.1} parent=5 // pred_check_branch
        %520 = sbr.rel (%p518) target = $region56
      $region55: #{tpu_custom_call.1} parent=5 // pred_region
        %s521 = ssub.s32 %s14, 2
        // Predicated region
        $region57: #{tpu_custom_call.1} parent=55 // pred_check
          %p522 = pneg %p174
        $region58: #{tpu_custom_call.1} parent=55 // pred_check_branch
          %524 = sbr.rel (%p522) target = $region60
        $region59: #{tpu_custom_call.1} parent=55 // pred_region
          %s525 = sand.u32 %s159, 1
          %s526 = scalar_lea.sflag [#allocation5], %s525
          %s527 = sand.u32 %s159, 1
          %s528 = scalar_lea.vmem [#allocation4], %s527
          %529 = dma.done %s526, 16
        $region60: #{tpu_custom_call.1} parent=55 // pred_fallthru
          _
      $region56: #{tpu_custom_call.1} parent=5 // pred_fallthru
        _
    $region6: #{tpu_custom_call.1} parent=1 // loop_footer
      %s18 = sadd.s32 1, %s14
    $region7: #{tpu_custom_call.1} parent=1 // loop_footer_branch
      %13 = sbr.rel target = $region3
    $region8: #{tpu_custom_call.1} parent=1 // loop_exit
      _
    %530 = vsyncpa [#allocation5], 1
    %s531 = scalar_lea.sflag [#allocation5], 1
    %532 = vsyncpa %s531, 1

</llo_original>
